<compile_context>
chip_gen: v7x
topology: tpu7x:2x2x1
jax: 0.10.0
libtpu: 0.0.40
codegen_flags: <defaults>
</compile_context>

<pallas_src>
import functools

import jax
import jax.numpy as jnp
from jax import lax
from jax.experimental import pallas as pl
from jax.experimental.pallas import tpu as pltpu

BN_EPS = 1e-5
DROP_P = 0.25
KEEP_SCALE = 1.0 / (1.0 - DROP_P)
DROP_THRESHOLD_U8 = int(DROP_P * 256)   # keep iff uniform uint8 bits >= 64 (P = 0.75)


def _round_up(x, m):
    return (x + m - 1) // m * m


def _vmem_limit_bytes():
    """~96 MiB on 128-MiB-VMEM chips (v4/v5e/v6e); 48 MiB on v7x (64 MiB physical)."""
    try:
        kind = jax.devices()[0].device_kind.lower()
    except Exception:
        return 64 * 1024 * 1024
    if "v7" in kind:
        return 48 * 1024 * 1024
    return 96 * 1024 * 1024


# ---------------------------------------------------------------------------
# Pass 1: accumulate per-feature sum / sum-of-squares of z = h @ W1 across
# row tiles.  Grid = (nsplit, tiles_per_split); the leading "parallel" axis
# shards the row tiles across TensorCores, each core accumulating into its
# own (2, hidden) slab of the (nsplit, 2, hidden) output.
# ---------------------------------------------------------------------------
def _bn_stats_kernel(h_ref, w1_ref, part_ref, *, n_valid, tile_rows, tiles_per_split):
    c = pl.program_id(0)
    j = pl.program_id(1)
    tile = c * tiles_per_split + j          # un-clamped global row-tile index

    z = jnp.dot(h_ref[...].astype(jnp.bfloat16), w1_ref[...],
                preferred_element_type=jnp.float32)

    # Zero rows past the real batch: ragged last tile and duplicated tiles from
    # the core split (whose index_map was clamped) must not pollute the stats.
    row = tile * tile_rows + lax.broadcasted_iota(jnp.int32, z.shape, 0)
    z = jnp.where(row < n_valid, z, 0.0)

    @pl.when(j == 0)
    def _():
        part_ref[...] = jnp.zeros_like(part_ref)

    # Single merged accumulator store (one masked vst instead of two).
    part_ref[...] += jnp.concatenate(
        [jnp.sum(z, axis=0, keepdims=True),
         jnp.sum(z * z, axis=0, keepdims=True)], axis=0)


# ---------------------------------------------------------------------------
# Pass 2: per row tile: z = h @ W1, folded BN affine (keep-scale pre-folded),
# ReLU, dropout select, second Linear.
# ---------------------------------------------------------------------------
def _mlp_apply_kernel(h_ref, w1_ref, s_ref, t_ref, w2_ref, b2_ref, bits_ref, out_ref):
    z = jnp.dot(h_ref[...].astype(jnp.bfloat16), w1_ref[...],
                preferred_element_type=jnp.float32)

    # Folded BatchNorm affine + ReLU (dropout 1/(1-p) already folded into s/t).
    a = jnp.maximum(z * s_ref[...] + t_ref[...], 0.0)

    # Dropout p=0.25 as a pure select on pre-generated uniform uint8 bits.
    # TODO(synk): in-kernel pltpu.prng_seed/prng_random_bits would remove this
    # HBM stream entirely when host-reproducible masks are not required.
    keep = bits_ref[...].astype(jnp.int32) >= DROP_THRESHOLD_U8
    a = jnp.where(keep, a, 0.0)

    out_ref[...] = (jnp.dot(a.astype(jnp.bfloat16), w2_ref[...],
                            preferred_element_type=jnp.float32) + b2_ref[...])


def mlp_layer(h, params, dropout_bits, *, tile_rows=1024):
    """Training-mode forward of MLP_layer.

    h:            (N, input_dim) float32
    dropout_bits: (N, hidden_dim) uint8 uniform random bits (keep iff >= 64)
    returns:      (N, output_dim) float32
    """
    n, in_dim = h.shape
    hidden = params["w1"].shape[1]
    out_dim = params["w2"].shape[1]

    # Row tile: whole batch if it fits, else `tile_rows` (multiple of 32 so the
    # uint8 bit tiles respect packed-sublane tiling); last tile may be ragged.
    tile_rows = max(32, _round_up(tile_rows, 32))
    tn = n if n <= tile_rows else tile_rows
    num_tiles = pl.cdiv(n, tn)
    nsplit = 2 if num_tiles >= 2 else 1         # pass-1 core split (v7x has 2 TCs)
    tiles_per_split = pl.cdiv(num_tiles, nsplit)

    vmem_limit = _vmem_limit_bytes()
    f32 = jnp.float32

    w1 = params["w1"].astype(jnp.bfloat16)      # tiny one-time weight casts
    w2 = params["w2"].astype(jnp.bfloat16)
    b2 = params["b2"].astype(f32)

    # ---- pass 1: batch statistics of z = h @ W1 (b1 cancels inside BN) ----
    partials = pl.pallas_call(
        functools.partial(_bn_stats_kernel, n_valid=n, tile_rows=tn,
                          tiles_per_split=tiles_per_split),
        out_shape=jax.ShapeDtypeStruct((nsplit, 2, hidden), f32),
        grid=(nsplit, tiles_per_split),
        in_specs=[
            pl.BlockSpec(
                (tn, in_dim),
                lambda c, j: (jnp.minimum(c * tiles_per_split + j, num_tiles - 1), 0)),
            pl.BlockSpec((in_dim, hidden), lambda c, j: (0, 0)),
        ],
        out_specs=pl.BlockSpec((None, 2, hidden), lambda c, j: (c, 0, 0)),
        compiler_params=pltpu.CompilerParams(
            dimension_semantics=("parallel", "arbitrary"),
            vmem_limit_bytes=vmem_limit),
    )(h.astype(f32), w1)

    # ---- tiny host fold: (1, hidden) math ----
    stats = jnp.sum(partials, axis=0)
    mean = stats[0:1, :] / n
    # TODO(synk): E[z^2]-E[z]^2 in f32 can cancel for very large N; switch to a
    # shifted / Welford-style accumulation if that regime matters.
    var = jnp.maximum(stats[1:2, :] / n - mean * mean, 0.0)   # biased var (torch)
    s = params["gamma"].reshape(1, hidden).astype(f32) * lax.rsqrt(var + BN_EPS)
    t = params["beta"].reshape(1, hidden).astype(f32) - mean * s
    # Fold the dropout inverted scale: ReLU(K*x) == K*ReLU(x) for K > 0.
    s = s * KEEP_SCALE
    t = t * KEEP_SCALE

    # ---- pass 2: z*s + t, ReLU, dropout select, second Linear ----
    cost = pl.CostEstimate(
        flops=2 * n * in_dim * hidden + 2 * n * hidden * out_dim,
        transcendentals=0,
        bytes_accessed=(h.size * 4 + dropout_bits.size + n * out_dim * 4
                        + w1.size * 2 + w2.size * 2),
    )
    # TODO(synk): on v7x, pin the w1/w2 BlockSpecs to pipeline_mode=pl.Buffered(1)
    # (they are grid-invariant) after verifying with pl.lower_as_mlir.
    # TODO(synk): on v5e (compute-poor), emit bf16 z from pass 1 and skip the
    # first matmul here when in_dim >> hidden_dim.
    out = pl.pallas_call(
        _mlp_apply_kernel,
        out_shape=jax.ShapeDtypeStruct((n, out_dim), f32),
        grid=(num_tiles,),
        in_specs=[
            pl.BlockSpec((tn, in_dim), lambda i: (i, 0)),
            pl.BlockSpec((in_dim, hidden), lambda i: (0, 0)),
            pl.BlockSpec((1, hidden), lambda i: (0, 0)),
            pl.BlockSpec((1, hidden), lambda i: (0, 0)),
            pl.BlockSpec((hidden, out_dim), lambda i: (0, 0)),
            pl.BlockSpec((1, out_dim), lambda i: (0, 0)),
            pl.BlockSpec((tn, hidden), lambda i: (i, 0)),
        ],
        out_specs=pl.BlockSpec((tn, out_dim), lambda i: (i, 0)),
        compiler_params=pltpu.CompilerParams(
            dimension_semantics=("parallel",),
            vmem_limit_bytes=vmem_limit),
        cost_estimate=cost,
    )(h.astype(f32), w1, s, t, w2, b2, dropout_bits)

    return out


def init_params(key, input_dim, hidden_dim, output_dim):
    """nn.Linear default init (U(+-1/sqrt(fan_in))) + BatchNorm1d defaults."""
    k1, k2, k3, k4 = jax.random.split(key, 4)
    lim1 = 1.0 / jnp.sqrt(input_dim)
    lim2 = 1.0 / jnp.sqrt(hidden_dim)
    return {
        # weights stored as (in, out) = torch weight transposed
        "w1": jax.random.uniform(k1, (input_dim, hidden_dim), jnp.float32, -lim1, lim1),
        "b1": jax.random.uniform(k2, (1, hidden_dim), jnp.float32, -lim1, lim1),
        "gamma": jnp.ones((1, hidden_dim), jnp.float32),
        "beta": jnp.zeros((1, hidden_dim), jnp.float32),
        "w2": jax.random.uniform(k3, (hidden_dim, output_dim), jnp.float32, -lim2, lim2),
        "b2": jax.random.uniform(k4, (1, output_dim), jnp.float32, -lim2, lim2),
    }


def mlp_layer_ref(h, params, dropout_bits):
    """Pure-JAX reference (f32 matmuls, includes b1, same dropout bits)."""
    z = h @ params["w1"] + params["b1"]
    mean = jnp.mean(z, axis=0, keepdims=True)
    var = jnp.mean((z - mean) ** 2, axis=0, keepdims=True)
    zn = (z - mean) * lax.rsqrt(var + BN_EPS) * params["gamma"] + params["beta"]
    a = jnp.maximum(zn, 0.0)
    keep = dropout_bits.astype(jnp.int32) >= DROP_THRESHOLD_U8
    a = jnp.where(keep, a * KEEP_SCALE, 0.0)
    return a @ params["w2"] + params["b2"]


if __name__ == "__main__":
    N, INPUT_DIM, HIDDEN_DIM, OUTPUT_DIM = 8, 16, 32, 8

    key = jax.random.PRNGKey(0)
    k_h, k_p, k_d = jax.random.split(key, 3)
    h = jax.random.normal(k_h, (N, INPUT_DIM), jnp.float32)
    params = init_params(k_p, INPUT_DIM, HIDDEN_DIM, OUTPUT_DIM)
    dropout_bits = jax.random.bits(k_d, (N, HIDDEN_DIM), jnp.uint8)

    out = mlp_layer(h, params, dropout_bits)
    out = jax.block_until_ready(out)

    assert out.shape == (N, OUTPUT_DIM), out.shape
    assert bool(jnp.all(jnp.isfinite(out)))

    ref = mlp_layer_ref(h, params, dropout_bits)
    max_err = float(jnp.max(jnp.abs(out - ref)))
    assert bool(jnp.allclose(out, ref, rtol=5e-2, atol=5e-2)), max_err

    print("KERNEL_OK")
</pallas_src>

<mosaic_0001>
module attributes {stable_mosaic.version = 11 : i64} {
  func.func @_bn_stats_kernel(%arg0: i32, %arg1: i32, %arg2: memref<8x16xf32, #tpu.memory_space<vmem>>, %arg3: memref<16x32xbf16, #tpu.memory_space<vmem>>, %arg4: memref<1x2x32xf32, #tpu.memory_space<vmem>>) attributes {dimension_semantics = [#tpu.dimension_semantics<parallel>, #tpu.dimension_semantics<arbitrary>], iteration_bounds = array<i64: 1, 1>, scalar_prefetch = 0 : i64, scratch_operands = 0 : i64, tpu.core_type = #tpu.core_type<tc>, window_params = [{transform_indices = @transform_0, window_bounds = array<i64: 8, 16>}, {pipeline_mode = #tpu.pipeline_mode<synchronous>, transform_indices = @transform_1, window_bounds = array<i64: 16, 32>}, {transform_indices = @transform_2, window_bounds = array<i64: 1, 2, 32>}]} {
    %c1_i32 = arith.constant 1 : i32
    %0 = arith.muli %arg0, %c1_i32 : i32
    %1 = arith.addi %0, %arg1 : i32
    %c0 = arith.constant 0 : index
    %c0_0 = arith.constant 0 : index
    %2 = vector.load %arg2[%c0, %c0_0] : memref<8x16xf32, #tpu.memory_space<vmem>>, vector<8x16xf32>
    %3 = arith.truncf %2 : vector<8x16xf32> to vector<8x16xbf16>
    %c0_1 = arith.constant 0 : index
    %c0_2 = arith.constant 0 : index
    %4 = vector.load %arg3[%c0_1, %c0_2] : memref<16x32xbf16, #tpu.memory_space<vmem>>, vector<16x32xbf16>
    %cst = arith.constant dense<0.000000e+00> : vector<8x32xf32>
    %5 = tpu.matmul %3, %4, %cst {dimension_numbers = #tpu.dot_dimension_numbers<[1], [0], [0], [1], [0, 0, 1, 1], [], []>} : vector<8x16xbf16>, vector<16x32xbf16>, vector<8x32xf32> -> vector<8x32xf32>
    %c8_i32 = arith.constant 8 : i32
    %6 = arith.muli %1, %c8_i32 : i32
    %7 = tpu.iota {dimensions = array<i32: 0>} : vector<8x32xi32>
    %8 = vector.broadcast %6 : i32 to vector<8x32xi32>
    %9 = arith.addi %8, %7 : vector<8x32xi32>
    %c8_i32_3 = arith.constant 8 : i32
    %10 = vector.broadcast %c8_i32_3 : i32 to vector<8x32xi32>
    %11 = arith.cmpi slt, %9, %10 : vector<8x32xi32>
    %cst_4 = arith.constant 0.000000e+00 : f32
    %12 = vector.broadcast %cst_4 : f32 to vector<8x32xf32>
    %13 = arith.select %11, %5, %12 : vector<8x32xi1>, vector<8x32xf32>
    %c0_i32 = arith.constant 0 : i32
    %14 = arith.cmpi eq, %arg1, %c0_i32 : i32
    %15 = arith.extui %14 : i1 to i32
    %c0_i32_5 = arith.constant 0 : i32
    %16 = arith.cmpi ne, %15, %c0_i32_5 : i32
    scf.if %16 {
      %cst_14 = arith.constant 0.000000e+00 : f32
      %29 = vector.broadcast %cst_14 : f32 to vector<2x32xf32>
      %c0_15 = arith.constant 0 : index
      %c0_16 = arith.constant 0 : index
      %c0_17 = arith.constant 0 : index
      %30 = vector.load %arg4[%c0_15, %c0_16, %c0_17] : memref<1x2x32xf32, #tpu.memory_space<vmem>>, vector<1x2x32xf32>
      %31 = vector.shape_cast %30 : vector<1x2x32xf32> to vector<2x32xf32>
      %32 = vector.shape_cast %29 : vector<2x32xf32> to vector<1x2x32xf32>
      tpu.vector_store %arg4[%c0_15, %c0_16, %c0_17], %32 {strides = array<i32>} : memref<1x2x32xf32, #tpu.memory_space<vmem>>, vector<1x2x32xf32>,
    } else {
    }
    %c0_6 = arith.constant 0 : index
    %c0_7 = arith.constant 0 : index
    %c0_8 = arith.constant 0 : index
    %17 = vector.load %arg4[%c0_6, %c0_7, %c0_8] : memref<1x2x32xf32, #tpu.memory_space<vmem>>, vector<1x2x32xf32>
    %18 = vector.shape_cast %17 : vector<1x2x32xf32> to vector<2x32xf32>
    %cst_9 = arith.constant dense<0.000000e+00> : vector<32xf32>
    %19 = vector.multi_reduction <add>, %13, %cst_9 [0] : vector<8x32xf32> to vector<32xf32>
    %20 = vector.shape_cast %19 : vector<32xf32> to vector<1x32xf32>
    %21 = arith.mulf %13, %13 : vector<8x32xf32>
    %cst_10 = arith.constant dense<0.000000e+00> : vector<32xf32>
    %22 = vector.multi_reduction <add>, %21, %cst_10 [0] : vector<8x32xf32> to vector<32xf32>
    %23 = vector.shape_cast %22 : vector<32xf32> to vector<1x32xf32>
    %24 = tpu.concatenate %20, %23 in 0 : vector<1x32xf32>, vector<1x32xf32> -> vector<2x32xf32>
    %25 = arith.addf %18, %24 : vector<2x32xf32>
    %c0_11 = arith.constant 0 : index
    %c0_12 = arith.constant 0 : index
    %c0_13 = arith.constant 0 : index
    %26 = vector.load %arg4[%c0_11, %c0_12, %c0_13] : memref<1x2x32xf32, #tpu.memory_space<vmem>>, vector<1x2x32xf32>
    %27 = vector.shape_cast %26 : vector<1x2x32xf32> to vector<2x32xf32>
    %28 = vector.shape_cast %25 : vector<2x32xf32> to vector<1x2x32xf32>
    tpu.vector_store %arg4[%c0_11, %c0_12, %c0_13], %28 {strides = array<i32>} : memref<1x2x32xf32, #tpu.memory_space<vmem>>, vector<1x2x32xf32>,
    return
  }
  func.func @transform_0(%arg0: i32, %arg1: i32) -> (i32, i32) {
    %c1_i32 = arith.constant 1 : i32
    %0 = arith.muli %arg0, %c1_i32 : i32
    %1 = arith.addi %0, %arg1 : i32
    %c0_i32 = arith.constant 0 : i32
    %2 = arith.minsi %1, %c0_i32 : i32
    %c0_i32_0 = arith.constant 0 : i32
    %c0_i32_1 = arith.constant 0 : i32
    return %2, %c0_i32_0 : i32, i32
  }
  func.func @transform_1(%arg0: i32, %arg1: i32) -> (i32, i32) {
    %c0_i32 = arith.constant 0 : i32
    %c0_i32_0 = arith.constant 0 : i32
    %c0_i32_1 = arith.constant 0 : i32
    return %c0_i32, %c0_i32_0 : i32, i32
  }
  func.func @transform_2(%arg0: i32, %arg1: i32) -> (i32, i32, i32) {
    %c0_i32 = arith.constant 0 : i32
    %c0_i32_0 = arith.constant 0 : i32
    %c0_i32_1 = arith.constant 0 : i32
    return %arg0, %c0_i32, %c0_i32_0 : i32, i32, i32
  }
}

</mosaic_0001>

<llo_original>
// kernel: tpu_custom_call.1
$region0: #{tpu_custom_call.1}
  #allocation0 [shape = 'u32[]', space=smem, size = 0x4, offset = 0x4, fixed_abs, tag = 'smem constant byte address 0x4 - core index']
  #allocation1 [shape = 'u32[144,128]{1,0:T(1,128)}', space=vmem, size = 0x12000, scoped, tag = 'internal scratch']
  %s0 = inlined_call_operand.hbm [shape: f32[8,16], index: 0, kind: input, shape index: {}]
  %s1 = inlined_call_operand.hbm [shape: bf16[16,32], index: 1, kind: input, shape index: {}]
  %s2 = inlined_call_operand.hbm [shape: f32[1,2,32], index: 2, kind: output, shape index: {}]
  %s3 = sld [smem:[#allocation0]]
  $region30: #{tpu_custom_call.1} parent=0
    _
  %s5 = ssub.s32 1, %s3
  %s6 = scalar_select 0, %s5, %s3
  $region1: #{tpu_custom_call.1} parent=0
    #allocation2 [shape = 'u8[4096]{0}', space=vmem, size = 0x1000, scoped, tag = 'input window, operand 0, single buffered']
    #allocation3 [shape = 's32[1]{0}', space=sflag, size = 0x4, scoped, tag = 'scoped memory for tpu_custom_call.1']
    #allocation4 [shape = 's32[1]{0}', space=sflag, size = 0x4, scoped, tag = 'scoped memory for tpu_custom_call.1']
    #allocation5 [shape = 'u8[4096]{0}', space=vmem, size = 0x1000, scoped, tag = 'input window, operand 1, single buffered']
    #allocation6 [shape = 's32[1]{0}', space=sflag, size = 0x4, scoped, tag = 'scoped memory for tpu_custom_call.1']
    #allocation7 [shape = 'u8[1024]{0}', space=vmem, size = 0x400, scoped, tag = 'output window, operand 0, single buffered']
    %7 = vsyncpa [#allocation3], 0
    %8 = vsyncpa [#allocation6], 0
    %9 = vsyncpa [#allocation4], 0
    // Predicated region
    $region2: #{tpu_custom_call.1} parent=1 // pred_check
      _
    $region3: #{tpu_custom_call.1} parent=1 // pred_check_branch
      %11 = sbr.rel (0) target = $region5
    $region4: #{tpu_custom_call.1} parent=1 // pred_region
      %s12 = sadd.s32 0, 0
      %p13 = scmp.lt.s32.totalorder %s12, 0
      %s14 = scalar_select %p13, %s12, 0
      %s16 = ssub.s32 128, 128
      %17 = vsyncadd [#allocation3], %s16
      %s18 = smul.addr %s14, 128
      %s19 = scalar_lea.hbm %s0, %s18
      %s21 = sshll.u32 [#allocation2], 4
      %s22 = int_to_ptr.vmem [resolvable:$true] %s21
      %24 = dma.hbm_to_vmem [thread:$0]  %s19, 128, %s22, [#allocation3]
    $region5: #{tpu_custom_call.1} parent=1 // pred_fallthru
      _
    // Predicated region
    $region6: #{tpu_custom_call.1} parent=1 // pred_check
      _
    $region7: #{tpu_custom_call.1} parent=1 // pred_check_branch
      %26 = sbr.rel (0) target = $region9
    $region8: #{tpu_custom_call.1} parent=1 // pred_region
      %s28 = ssub.s32 128, 128
      %29 = vsyncadd [#allocation6], %s28
      %s30 = sshll.u32 [#allocation5], 4
      %s31 = int_to_ptr.vmem [resolvable:$true] %s30
      %36 = dma.hbm_to_vmem [thread:$0]  %s1, 128, %s31, [#allocation6], 64, 64, 4
    $region9: #{tpu_custom_call.1} parent=1 // pred_fallthru
      _
    // Predicated region
    $region10: #{tpu_custom_call.1} parent=1 // pred_check
      _
    $region11: #{tpu_custom_call.1} parent=1 // pred_check_branch
      %38 = sbr.rel (0) target = $region13
    $region12: #{tpu_custom_call.1} parent=1 // pred_region
      %39 = dma.done [#allocation3], 128
    $region13: #{tpu_custom_call.1} parent=1 // pred_fallthru
      _
    // Predicated region
    $region14: #{tpu_custom_call.1} parent=1 // pred_check
      _
    $region15: #{tpu_custom_call.1} parent=1 // pred_check_branch
      %41 = sbr.rel (0) target = $region17
    $region16: #{tpu_custom_call.1} parent=1 // pred_region
      %42 = dma.done [#allocation6], 128
    $region17: #{tpu_custom_call.1} parent=1 // pred_fallthru
      _
    %s43 = sadd.s32 0, 0
    %p44 = scmp.lt.s32.totalorder %s43, 0
    %s45 = scalar_select %p44, %s43, 0
    %s47 = sadd.s32 0, 0
    %v48 = vld [vmem:[#allocation2] sm:$0xff]
    %v49 = vpack.c.bf16 %v48, %v48
    %v50 = vld [vmem:[#allocation5] sm:$0xf]
    %v51 = vld [vmem:[#allocation5 + $0x4] sm:$0xf]
    %v54 = vunpack.c.l.b16 %v50
    %v55 = vunpack.c.l.b16 %v51
    %v56 = vpack.c.b16 %v55, %v54
    %vm58 = vcmask 130048
    %v60 = vsel %vm58, %v49, 0
    %62 = vmatprep.subr.bf16.mxu0 0
    %63 = vmatpush1.bf16.msra.mxu0 %v56
    %64 = vmatprep.subr.bf16.mxu0 0
    %65 = vmatpush1.bf16.msra.mxu0 0
    %66 = vmatprep.subr.bf16.mxu0 0
    %67 = vmatpush1.bf16.msra.mxu0 0
    %68 = vmatprep.subr.bf16.mxu0 0
    %69 = vmatpush1.bf16.msra.mxu0 0
    %70 = vmatprep.subr.bf16.mxu0 0
    %71 = vmatpush1.bf16.msra.mxu0 0
    %72 = vmatprep.subr.bf16.mxu0 0
    %73 = vmatpush1.bf16.msra.mxu0 0
    %74 = vmatprep.subr.bf16.mxu0 0
    %75 = vmatpush1.bf16.msra.mxu0 0
    %76 = vmatprep.subr.bf16.mxu0 0
    %77 = vmatpush1.bf16.msra.mxu0 0
    %78 = vmatprep.subr.bf16.mxu0 0
    %79 = vmatpush1.bf16.msra.mxu0 0
    %80 = vmatprep.subr.bf16.mxu0 0
    %81 = vmatpush1.bf16.msra.mxu0 0
    %82 = vmatprep.subr.bf16.mxu0 0
    %83 = vmatpush1.bf16.msra.mxu0 0
    %84 = vmatprep.subr.bf16.mxu0 0
    %85 = vmatpush1.bf16.msra.mxu0 0
    %86 = vmatprep.subr.bf16.mxu0 0
    %87 = vmatpush1.bf16.msra.mxu0 0
    %88 = vmatprep.subr.bf16.mxu0 0
    %89 = vmatpush1.bf16.msra.mxu0 0
    %90 = vmatprep.subr.bf16.mxu0 0
    %91 = vmatpush1.bf16.msra.mxu0 0
    %92 = vmatprep.subr.bf16.mxu0 0
    %93 = vmatpush1.bf16.msra.mxu0 0
    %94 = vmatprep.mubr.bf16.mxu0 0
    %95 = vmatmul.mubr.bf16.gmra.mrb[0].mxu0 %v60
    %v96 = vpop.f32.mrb[0].mxu0
    %v97 = vadd.f32 0.0, %v96
    %v98 = vpop.f32.mrb[0].mxu0
    %v99 = vpop.f32.mrb[0].mxu0
    %v100 = vpop.f32.mrb[0].mxu0
    %101 = vdwg.mxu0
    %s102 = smul.u32 %s47, 8
    %v103 = vlaneseq
    %v104 = vshrl.u32 %v103, 7
    %v105 = vstv %s102
    %v106 = vadd.s32 %v105, %v104
    %vm107 = vcmp.lt.s32.totalorder %v106, 8
    %v108 = vsel %vm107, %v97, 0.0
    %p109 = scmp.eq.s32.totalorder 0, 0
    // Predicated region
    $region18: #{tpu_custom_call.1} parent=1 // pred_check
      %p110 = pneg %p109
    $region19: #{tpu_custom_call.1} parent=1 // pred_check_branch
      %112 = sbr.rel (%p110) target = $region21
    $region20: #{tpu_custom_call.1} parent=1 // pred_region
      %vm113 = vcmask 254976
      %114 = vst.msk [vmem:[#allocation7] sm:$0x3] %vm113, 0.0
    $region21: #{tpu_custom_call.1} parent=1 // pred_fallthru
      _
    %v115 = vld [vmem:[#allocation7] sm:$0x3]
    %vm116 = vcmask 261120
    %v117 = vsel %vm116, %v108, 0.0
    %v118 = vrot.slane %v117, 4
    %v119 = vadd.f32 %v117, %v118
    %v120 = vrot.slane %v119, 2
    %v121 = vadd.f32 %v119, %v120
    %v122 = vrot.slane %v121, 1
    %v123 = vadd.f32 %v121, %v122
    %v124 = vmul.f32 %v108, %v108
    %v125 = vsel %vm116, %v124, 0.0
    %v126 = vrot.slane %v125, 4
    %v127 = vadd.f32 %v125, %v126
    %v128 = vrot.slane %v127, 2
    %v129 = vadd.f32 %v127, %v128
    %v130 = vrot.slane %v129, 1
    %v131 = vadd.f32 %v129, %v130
    %vm132 = vcmask 1040384
    %v133 = vsel %vm132, %v123, %v131
    %v134 = vadd.f32 %v115, %v133
    %vm135 = vcmask 254976
    %136 = vst.msk [vmem:[#allocation7] sm:$0x3] %vm135, %v134
    // Predicated region
    $region22: #{tpu_custom_call.1} parent=1 // pred_check
      _
    $region23: #{tpu_custom_call.1} parent=1 // pred_check_branch
      %138 = sbr.rel (0) target = $region25
    $region24: #{tpu_custom_call.1} parent=1 // pred_region
      %s140 = ssub.s32 32, 32
      %141 = vsyncadd [#allocation4], %s140
      %s143 = sshll.u32 [#allocation7], 4
      %s144 = int_to_ptr.vmem [resolvable:$true] %s143
      %146 = dma.vmem_to_hbm [thread:$0]  %s144, 32, %s2, [#allocation4]
    $region25: #{tpu_custom_call.1} parent=1 // pred_fallthru
      _
    // Predicated region
    $region26: #{tpu_custom_call.1} parent=1 // pred_check
      _
    $region27: #{tpu_custom_call.1} parent=1 // pred_check_branch
      %148 = sbr.rel (0) target = $region29
    $region28: #{tpu_custom_call.1} parent=1 // pred_region
      %149 = dma.done [#allocation4], 32
    $region29: #{tpu_custom_call.1} parent=1 // pred_fallthru
      _
    %150 = vsyncpa [#allocation3], 1
    %151 = vsyncpa [#allocation6], 1
    %152 = vsyncpa [#allocation4], 1

</llo_original>
